<compile_context>
chip_gen: v6e
topology: v6e:2x2x1
jax: 0.10.0
libtpu: 0.0.40
codegen_flags: <defaults>
</compile_context>

<pallas_src>
import functools

import jax
import jax.numpy as jnp
from jax import lax
from jax.experimental import pallas as pl
from jax.experimental.pallas import tpu as pltpu


# ---------------------------------------------------------------------------
# Kernel: one (image, channel-tile) per grid step.
#   x_ref  : (1, H, W, TC)       input tokens, channels last (lane dim)
#   w_ref  : (9, TC)             depthwise taps, tap index t = di*3 + dj (HWC)
#   b_ref  : (1, 1, TC)          bias
#   o_ref  : (1, H, W, TC)       output tokens
#   xs_ref : (H+2, W+2, TC) f32  VMEM scratch holding the zero-haloed image
# ---------------------------------------------------------------------------
def dwconv_kernel(x_ref, w_ref, b_ref, o_ref, xs_ref, *, H, W):
    TC = o_ref.shape[-1]

    # Build the 1-pixel zero halo entirely in VMEM (no extra HBM round trip).
    xs_ref[...] = jnp.zeros_like(xs_ref)
    # Single block load + single f32 cast (hoisted out of the tap loop).
    xs_ref[1:H + 1, 1:W + 1, :] = x_ref[0].astype(jnp.float32)

    w = w_ref[...].astype(jnp.float32)              # (9, TC)
    b = b_ref[...].astype(jnp.float32)              # (1, 1, TC)

    acc = jnp.zeros((H, W, TC), jnp.float32)
    # Outer dj: 3 sublane-offset (W-shift) views of the padded scratch.
    # Inner di: leading-dim (H-shift) slices of the loaded column -- free.
    for dj in range(3):
        col = xs_ref[:, dj:dj + W, :]               # (H+2, W, TC)
        for di in range(3):
            t = di * 3 + dj
            acc = acc + col[di:di + H] * w[t].reshape(1, 1, TC)   # VPU FMA

    # TODO(synk): when used inside the full PVT MLP, fuse the GELU epilogue
    # here (EUP slot is idle); left out to keep this module's exact semantics.
    # TODO(synk): on v7x with bf16 I/O, accumulate in 8-row strips via
    # lax.fori_loop(unroll=True) to bound vreg live ranges.
    o_ref[0] = (acc + b).astype(o_ref.dtype)


# ---------------------------------------------------------------------------
# Host-side wrapper
# ---------------------------------------------------------------------------
def dwconv(x, weight, bias, *, H, W, tile_c=None):
    """x: (B, N, C) tokens (N = H*W, row-major).
    weight: (3, 3, C) depthwise taps, HWC layout.  (Porting from PyTorch's
    (C, 1, 3, 3) weights: w.squeeze(1).transpose(1, 2, 0).)
    bias: (C,)."""
    B, N, C = x.shape
    assert N == H * W
    assert W % 8 == 0, "W must be a multiple of 8 for tile-aligned blocks"

    if tile_c is None:
        tile_c = min(C, 256)   # bounds per-step VMEM; safe on v7x's 64 MiB VMEM
    assert C % tile_c == 0 and tile_c % 128 == 0

    x_img = x.reshape(B, H, W, C)          # free metadata reshape, no pad
    w_flat = weight.reshape(9, C)          # tap-major: t = di*3 + dj
    b3 = bias.reshape(1, 1, C)

    kernel = functools.partial(dwconv_kernel, H=H, W=W)

    out = pl.pallas_call(
        kernel,
        out_shape=jax.ShapeDtypeStruct((B, H, W, C), x.dtype),
        grid=(B, C // tile_c),
        in_specs=[
            pl.BlockSpec((1, H, W, tile_c), lambda b, c: (b, 0, 0, c)),
            pl.BlockSpec((9, tile_c), lambda b, c: (0, c)),
            pl.BlockSpec((1, 1, tile_c), lambda b, c: (0, 0, c)),
        ],
        out_specs=pl.BlockSpec((1, H, W, tile_c), lambda b, c: (b, 0, 0, c)),
        scratch_shapes=[pltpu.VMEM((H + 2, W + 2, tile_c), jnp.float32)],
        compiler_params=pltpu.CompilerParams(
            dimension_semantics=("parallel", "parallel")),   # shard B and C tiles
    )(x_img, w_flat, b3)

    return out.reshape(B, N, C)            # (H, W) -> N merge on host: free


# ---------------------------------------------------------------------------
# Pure-JAX reference (matches PyTorch nn.Conv2d(dim, dim, 3, 1, 1, groups=dim))
# ---------------------------------------------------------------------------
def ref_dwconv(x, weight, bias, H, W):
    B, N, C = x.shape
    img = x.reshape(B, H, W, C)
    out = lax.conv_general_dilated(
        img, weight.reshape(3, 3, 1, C),
        window_strides=(1, 1), padding=((1, 1), (1, 1)),
        dimension_numbers=("NHWC", "HWIO", "NHWC"),
        feature_group_count=C) + bias
    return out.reshape(B, N, C)


# ---------------------------------------------------------------------------
if __name__ == "__main__":
    B, H, W, C = 2, 16, 16, 128          # N = 256; C lane-dense (multiple of 128)
    N = H * W

    key = jax.random.PRNGKey(0)
    kx, kw, kb = jax.random.split(key, 3)
    x = jax.random.normal(kx, (B, N, C), jnp.float32)
    # Depthwise 3x3 taps (PVT init: std = sqrt(2 / fan_out) = sqrt(2/9)).
    weight = jnp.sqrt(2.0 / 9.0) * jax.random.normal(kw, (3, 3, C), jnp.float32)
    bias = 0.1 * jax.random.normal(kb, (C,), jnp.float32)

    out = dwconv(x, weight, bias, H=H, W=W)
    out = jax.block_until_ready(out)

    ref = ref_dwconv(x, weight, bias, H, W)
    assert out.shape == (B, N, C)
    assert bool(jnp.all(jnp.isfinite(out)))
    max_err = float(jnp.max(jnp.abs(out - ref)))
    assert max_err < 1e-4, f"max abs error vs reference: {max_err}"

    print("KERNEL_OK")
</pallas_src>

<mosaic_0001>
module attributes {stable_mosaic.version = 11 : i64} {
  func.func @dwconv_kernel(%arg0: i32, %arg1: i32, %arg2: memref<1x16x16x128xf32, #tpu.memory_space<vmem>>, %arg3: memref<9x128xf32, #tpu.memory_space<vmem>>, %arg4: memref<1x1x128xf32, #tpu.memory_space<vmem>>, %arg5: memref<1x16x16x128xf32, #tpu.memory_space<vmem>>, %arg6: memref<18x18x128xf32, #tpu.memory_space<vmem>>) attributes {dimension_semantics = [#tpu.dimension_semantics<parallel>, #tpu.dimension_semantics<parallel>], iteration_bounds = array<i64: 2, 1>, scalar_prefetch = 0 : i64, scratch_operands = 1 : i64, tpu.core_type = #tpu.core_type<tc>, window_params = [{transform_indices = @transform_0, window_bounds = array<i64: 1, 16, 16, 128>}, {transform_indices = @transform_1, window_bounds = array<i64: 9, 128>}, {transform_indices = @transform_2, window_bounds = array<i64: 1, 1, 128>}, {transform_indices = @transform_3, window_bounds = array<i64: 1, 16, 16, 128>}]} {
    %cst = arith.constant 0.000000e+00 : f32
    %0 = vector.broadcast %cst : f32 to vector<18x18x128xf32>
    %c0 = arith.constant 0 : index
    %c0_0 = arith.constant 0 : index
    %c0_1 = arith.constant 0 : index
    %1 = vector.load %arg6[%c0, %c0_0, %c0_1] : memref<18x18x128xf32, #tpu.memory_space<vmem>>, vector<18x18x128xf32>
    tpu.vector_store %arg6[%c0, %c0_0, %c0_1], %0 {strides = array<i32>} : memref<18x18x128xf32, #tpu.memory_space<vmem>>, vector<18x18x128xf32>,
    %c0_2 = arith.constant 0 : index
    %c0_3 = arith.constant 0 : index
    %c0_4 = arith.constant 0 : index
    %c0_5 = arith.constant 0 : index
    %2 = vector.load %arg2[%c0_2, %c0_3, %c0_4, %c0_5] : memref<1x16x16x128xf32, #tpu.memory_space<vmem>>, vector<1x16x16x128xf32>
    %3 = vector.shape_cast %2 : vector<1x16x16x128xf32> to vector<16x16x128xf32>
    %c1 = arith.constant 1 : index
    %c1_6 = arith.constant 1 : index
    %c0_7 = arith.constant 0 : index
    %4 = vector.load %arg6[%c1, %c1_6, %c0_7] : memref<18x18x128xf32, #tpu.memory_space<vmem>>, vector<16x16x128xf32>
    tpu.vector_store %arg6[%c1, %c1_6, %c0_7], %3 {strides = array<i32>} : memref<18x18x128xf32, #tpu.memory_space<vmem>>, vector<16x16x128xf32>,
    %c0_8 = arith.constant 0 : index
    %c0_9 = arith.constant 0 : index
    %5 = vector.load %arg3[%c0_8, %c0_9] : memref<9x128xf32, #tpu.memory_space<vmem>>, vector<9x128xf32>
    %c0_10 = arith.constant 0 : index
    %c0_11 = arith.constant 0 : index
    %c0_12 = arith.constant 0 : index
    %6 = vector.load %arg4[%c0_10, %c0_11, %c0_12] : memref<1x1x128xf32, #tpu.memory_space<vmem>>, vector<1x1x128xf32>
    %cst_13 = arith.constant 0.000000e+00 : f32
    %7 = vector.broadcast %cst_13 : f32 to vector<16x16x128xf32>
    %c0_14 = arith.constant 0 : index
    %c0_15 = arith.constant 0 : index
    %c0_16 = arith.constant 0 : index
    %8 = vector.load %arg6[%c0_14, %c0_15, %c0_16] : memref<18x18x128xf32, #tpu.memory_space<vmem>>, vector<18x16x128xf32>
    %9 = vector.extract_strided_slice %8 {offsets = [0, 0, 0], sizes = [16, 16, 128], strides = [1, 1, 1]} : vector<18x16x128xf32> to vector<16x16x128xf32>
    %10 = vector.extract_strided_slice %5 {offsets = [0, 0], sizes = [1, 128], strides = [1, 1]} : vector<9x128xf32> to vector<1x128xf32>
    %11 = vector.shape_cast %10 : vector<1x128xf32> to vector<128xf32>
    %12 = vector.shape_cast %11 : vector<128xf32> to vector<1x1x128xf32>
    %13 = vector.broadcast %12 : vector<1x1x128xf32> to vector<16x16x128xf32>
    %14 = arith.mulf %9, %13 : vector<16x16x128xf32>
    %15 = arith.addf %7, %14 : vector<16x16x128xf32>
    %16 = vector.extract_strided_slice %8 {offsets = [1, 0, 0], sizes = [16, 16, 128], strides = [1, 1, 1]} : vector<18x16x128xf32> to vector<16x16x128xf32>
    %17 = vector.extract_strided_slice %5 {offsets = [3, 0], sizes = [1, 128], strides = [1, 1]} : vector<9x128xf32> to vector<1x128xf32>
    %18 = vector.shape_cast %17 : vector<1x128xf32> to vector<128xf32>
    %19 = vector.shape_cast %18 : vector<128xf32> to vector<1x1x128xf32>
    %20 = vector.broadcast %19 : vector<1x1x128xf32> to vector<16x16x128xf32>
    %21 = arith.mulf %16, %20 : vector<16x16x128xf32>
    %22 = arith.addf %15, %21 : vector<16x16x128xf32>
    %23 = vector.extract_strided_slice %8 {offsets = [2, 0, 0], sizes = [16, 16, 128], strides = [1, 1, 1]} : vector<18x16x128xf32> to vector<16x16x128xf32>
    %24 = vector.extract_strided_slice %5 {offsets = [6, 0], sizes = [1, 128], strides = [1, 1]} : vector<9x128xf32> to vector<1x128xf32>
    %25 = vector.shape_cast %24 : vector<1x128xf32> to vector<128xf32>
    %26 = vector.shape_cast %25 : vector<128xf32> to vector<1x1x128xf32>
    %27 = vector.broadcast %26 : vector<1x1x128xf32> to vector<16x16x128xf32>
    %28 = arith.mulf %23, %27 : vector<16x16x128xf32>
    %29 = arith.addf %22, %28 : vector<16x16x128xf32>
    %c0_17 = arith.constant 0 : index
    %c1_18 = arith.constant 1 : index
    %c0_19 = arith.constant 0 : index
    %30 = vector.load %arg6[%c0_17, %c1_18, %c0_19] : memref<18x18x128xf32, #tpu.memory_space<vmem>>, vector<18x16x128xf32>
    %31 = vector.extract_strided_slice %30 {offsets = [0, 0, 0], sizes = [16, 16, 128], strides = [1, 1, 1]} : vector<18x16x128xf32> to vector<16x16x128xf32>
    %32 = vector.extract_strided_slice %5 {offsets = [1, 0], sizes = [1, 128], strides = [1, 1]} : vector<9x128xf32> to vector<1x128xf32>
    %33 = vector.shape_cast %32 : vector<1x128xf32> to vector<128xf32>
    %34 = vector.shape_cast %33 : vector<128xf32> to vector<1x1x128xf32>
    %35 = vector.broadcast %34 : vector<1x1x128xf32> to vector<16x16x128xf32>
    %36 = arith.mulf %31, %35 : vector<16x16x128xf32>
    %37 = arith.addf %29, %36 : vector<16x16x128xf32>
    %38 = vector.extract_strided_slice %30 {offsets = [1, 0, 0], sizes = [16, 16, 128], strides = [1, 1, 1]} : vector<18x16x128xf32> to vector<16x16x128xf32>
    %39 = vector.extract_strided_slice %5 {offsets = [4, 0], sizes = [1, 128], strides = [1, 1]} : vector<9x128xf32> to vector<1x128xf32>
    %40 = vector.shape_cast %39 : vector<1x128xf32> to vector<128xf32>
    %41 = vector.shape_cast %40 : vector<128xf32> to vector<1x1x128xf32>
    %42 = vector.broadcast %41 : vector<1x1x128xf32> to vector<16x16x128xf32>
    %43 = arith.mulf %38, %42 : vector<16x16x128xf32>
    %44 = arith.addf %37, %43 : vector<16x16x128xf32>
    %45 = vector.extract_strided_slice %30 {offsets = [2, 0, 0], sizes = [16, 16, 128], strides = [1, 1, 1]} : vector<18x16x128xf32> to vector<16x16x128xf32>
    %46 = vector.extract_strided_slice %5 {offsets = [7, 0], sizes = [1, 128], strides = [1, 1]} : vector<9x128xf32> to vector<1x128xf32>
    %47 = vector.shape_cast %46 : vector<1x128xf32> to vector<128xf32>
    %48 = vector.shape_cast %47 : vector<128xf32> to vector<1x1x128xf32>
    %49 = vector.broadcast %48 : vector<1x1x128xf32> to vector<16x16x128xf32>
    %50 = arith.mulf %45, %49 : vector<16x16x128xf32>
    %51 = arith.addf %44, %50 : vector<16x16x128xf32>
    %c0_20 = arith.constant 0 : index
    %c2 = arith.constant 2 : index
    %c0_21 = arith.constant 0 : index
    %52 = vector.load %arg6[%c0_20, %c2, %c0_21] : memref<18x18x128xf32, #tpu.memory_space<vmem>>, vector<18x16x128xf32>
    %53 = vector.extract_strided_slice %52 {offsets = [0, 0, 0], sizes = [16, 16, 128], strides = [1, 1, 1]} : vector<18x16x128xf32> to vector<16x16x128xf32>
    %54 = vector.extract_strided_slice %5 {offsets = [2, 0], sizes = [1, 128], strides = [1, 1]} : vector<9x128xf32> to vector<1x128xf32>
    %55 = vector.shape_cast %54 : vector<1x128xf32> to vector<128xf32>
    %56 = vector.shape_cast %55 : vector<128xf32> to vector<1x1x128xf32>
    %57 = vector.broadcast %56 : vector<1x1x128xf32> to vector<16x16x128xf32>
    %58 = arith.mulf %53, %57 : vector<16x16x128xf32>
    %59 = arith.addf %51, %58 : vector<16x16x128xf32>
    %60 = vector.extract_strided_slice %52 {offsets = [1, 0, 0], sizes = [16, 16, 128], strides = [1, 1, 1]} : vector<18x16x128xf32> to vector<16x16x128xf32>
    %61 = vector.extract_strided_slice %5 {offsets = [5, 0], sizes = [1, 128], strides = [1, 1]} : vector<9x128xf32> to vector<1x128xf32>
    %62 = vector.shape_cast %61 : vector<1x128xf32> to vector<128xf32>
    %63 = vector.shape_cast %62 : vector<128xf32> to vector<1x1x128xf32>
    %64 = vector.broadcast %63 : vector<1x1x128xf32> to vector<16x16x128xf32>
    %65 = arith.mulf %60, %64 : vector<16x16x128xf32>
    %66 = arith.addf %59, %65 : vector<16x16x128xf32>
    %67 = vector.extract_strided_slice %52 {offsets = [2, 0, 0], sizes = [16, 16, 128], strides = [1, 1, 1]} : vector<18x16x128xf32> to vector<16x16x128xf32>
    %68 = vector.extract_strided_slice %5 {offsets = [8, 0], sizes = [1, 128], strides = [1, 1]} : vector<9x128xf32> to vector<1x128xf32>
    %69 = vector.shape_cast %68 : vector<1x128xf32> to vector<128xf32>
    %70 = vector.shape_cast %69 : vector<128xf32> to vector<1x1x128xf32>
    %71 = vector.broadcast %70 : vector<1x1x128xf32> to vector<16x16x128xf32>
    %72 = arith.mulf %67, %71 : vector<16x16x128xf32>
    %73 = arith.addf %66, %72 : vector<16x16x128xf32>
    %74 = vector.broadcast %6 : vector<1x1x128xf32> to vector<16x16x128xf32>
    %75 = arith.addf %73, %74 : vector<16x16x128xf32>
    %c0_22 = arith.constant 0 : index
    %c0_23 = arith.constant 0 : index
    %c0_24 = arith.constant 0 : index
    %c0_25 = arith.constant 0 : index
    %76 = vector.load %arg5[%c0_22, %c0_23, %c0_24, %c0_25] : memref<1x16x16x128xf32, #tpu.memory_space<vmem>>, vector<1x16x16x128xf32>
    %77 = vector.shape_cast %76 : vector<1x16x16x128xf32> to vector<16x16x128xf32>
    %78 = vector.shape_cast %75 : vector<16x16x128xf32> to vector<1x16x16x128xf32>
    tpu.vector_store %arg5[%c0_22, %c0_23, %c0_24, %c0_25], %78 {strides = array<i32>} : memref<1x16x16x128xf32, #tpu.memory_space<vmem>>, vector<1x16x16x128xf32>,
    return
  }
  func.func @transform_0(%arg0: i32, %arg1: i32) -> (i32, i32, i32, i32) {
    %c0_i32 = arith.constant 0 : i32
    %c0_i32_0 = arith.constant 0 : i32
    %c0_i32_1 = arith.constant 0 : i32
    return %arg0, %c0_i32, %c0_i32_0, %arg1 : i32, i32, i32, i32
  }
  func.func @transform_1(%arg0: i32, %arg1: i32) -> (i32, i32) {
    %c0_i32 = arith.constant 0 : i32
    %c0_i32_0 = arith.constant 0 : i32
    return %c0_i32, %arg1 : i32, i32
  }
  func.func @transform_2(%arg0: i32, %arg1: i32) -> (i32, i32, i32) {
    %c0_i32 = arith.constant 0 : i32
    %c0_i32_0 = arith.constant 0 : i32
    %c0_i32_1 = arith.constant 0 : i32
    return %c0_i32, %c0_i32_0, %arg1 : i32, i32, i32
  }
  func.func @transform_3(%arg0: i32, %arg1: i32) -> (i32, i32, i32, i32) {
    %c0_i32 = arith.constant 0 : i32
    %c0_i32_0 = arith.constant 0 : i32
    %c0_i32_1 = arith.constant 0 : i32
    return %arg0, %c0_i32, %c0_i32_0, %arg1 : i32, i32, i32, i32
  }
}

</mosaic_0001>

<llo_original>
// kernel: tpu_custom_call.1
$region0: #{tpu_custom_call.1}
  #allocation0 [shape = 'u32[]', space=smem, size = 0x4, offset = 0x4, fixed_abs, tag = 'smem constant byte address 0x4 - core index']
  #allocation1 [shape = 'u32[144,128]{1,0:T(1,128)}', space=vmem, size = 0x12000, scoped, tag = 'internal scratch']
  #allocation2 [shape = 'f32[18,18,128]{2,1,0:T(8,128)}', space=vmem, size = 0x36000, scoped, tag = 'scratch operand']
  %s0 = inlined_call_operand.hbm [shape: f32[2,16,16,128], index: 0, kind: input, shape index: {}]
  %s1 = inlined_call_operand.hbm [shape: f32[9,128], index: 1, kind: input, shape index: {}]
  %s2 = inlined_call_operand.vmem [shape: f32[1,1,128], index: 2, kind: input, shape index: {}]
  %s3 = inlined_call_operand.hbm [shape: f32[2,16,16,128], index: 3, kind: output, shape index: {}]
  %s4 = sld [smem:[#allocation0]]
  $region53: #{tpu_custom_call.1} parent=0
    _
  %s6 = ssub.s32 1, %s4
  %s7 = scalar_select 0, %s6, %s4
  $region1: #{tpu_custom_call.1} parent=0
    #allocation3 [shape = 'u8[262144]{0}', space=vmem, size = 0x40000, scoped, tag = 'input window, operand 0']
    #allocation4 [shape = 's32[2]{0}', space=sflag, size = 0x8, scoped, tag = 'scoped memory for tpu_custom_call.1']
    #allocation5 [shape = 's32[2]{0}', space=sflag, size = 0x8, scoped, tag = 'scoped memory for tpu_custom_call.1']
    #allocation6 [shape = 'u8[8192]{0}', space=vmem, size = 0x2000, scoped, tag = 'input window, operand 1, single buffered']
    #allocation7 [shape = 's32[1]{0}', space=sflag, size = 0x4, scoped, tag = 'scoped memory for tpu_custom_call.1']
    #allocation8 [shape = 'u8[262144]{0}', space=vmem, size = 0x40000, scoped, tag = 'output window, operand 0']
    %8 = vsyncpa [#allocation4], 0
    %s9 = scalar_lea.sflag [#allocation4], 1
    %10 = vsyncpa %s9, 0
    %11 = vsyncpa [#allocation7], 0
    %12 = vsyncpa [#allocation5], 0
    %s13 = scalar_lea.sflag [#allocation5], 1
    %14 = vsyncpa %s13, 0
    loop: start=0, step=1, limit=4
    $region2: #{tpu_custom_call.1} parent=1 // loop_pre_header
      _
    $region3: #{tpu_custom_call.1} parent=1 // loop_header
      %s16 = sphi 0, %s20
      %p17 = scmp.ge.s32.totalorder %s16, 4
      %s23 = sphi 0, %s35
      %s24 = sphi 0, %s31
      %s25 = sphi 0, %s23
      %s26 = sphi 0, %s24
      %s27 = sphi 0, %s25
      %s28 = sphi 0, %s26
      %s40 = sphi 0, %s42
      %s43 = sphi 0, %s40
      %s44 = sphi 0, %s43
      %s60 = sphi 0, %s44
      %s66 = sphi 0, %s68
      %s69 = sphi 0, %s66
      %s70 = sphi 0, %s69
      %s86 = sphi 0, %s70
      %s92 = sphi 0, %s94
      %s95 = sphi 0, %s92
      %s96 = sphi 0, %s95
      %s112 = sphi 0, %s96
      %s120 = sphi 0, %s122
      %s123 = sphi 0, %s120
      %s124 = sphi 0, %s123
      %s140 = sphi 0, %s124
    $region4: #{tpu_custom_call.1} parent=1 // loop_header_branch
      %19 = sbr.rel (%p17) target = $region8
    $region5: #{tpu_custom_call.1} parent=1 // loop_body
      %s21 = ssub.s32 %s16, 1
      %s22 = ssub.s32 %s16, 2
      %s29 = sadd.s32 1, %s24
      %p30 = scmp.ge.s32.totalorder %s29, 1
      %s31 = scalar_select %p30, 0, %s29
      %s32 = sadd.s32 1, %s23
      %s33 = scalar_select %p30, %s32, %s23
      %p34 = scmp.ge.s32.totalorder %s33, 2
      %s35 = scalar_select %p34, 0, %s33
      %s36 = ssub.s32 %s23, %s35
      %s37 = ssub.s32 %s24, %s31
      %s38 = sor.u32 %s36, %s37
      %p39 = scmp.eq.s32.totalorder %s38, 0
      %s41 = sadd.s32 %s40, 1
      %s42 = scalar_select %p39, %s40, %s41
      %p45 = pneg %p39
      %p46 = scmp.eq.s32.totalorder %s16, 1
      %p47 = por %p45, %p46
      %p48 = scmp.ne.s32.totalorder %s40, %s43
      %p49 = scmp.eq.s32.totalorder %s16, 0
      %p50 = por %p48, %p49
      %p51 = scmp.ne.s32.totalorder %s40, %s43
      %p52 = scmp.eq.s32.totalorder %s21, 1
      %p53 = por %p51, %p52
      %p54 = scmp.ne.s32.totalorder %s43, %s44
      %p55 = scmp.eq.s32.totalorder %s21, 0
      %p56 = por %p54, %p55
      %p57 = scmp.ne.s32.totalorder %s43, %s44
      %p58 = scmp.eq.s32.totalorder %s22, 1
      %p59 = por %p57, %p58
      %p61 = scmp.ne.s32.totalorder %s44, %s60
      %p62 = scmp.eq.s32.totalorder %s22, 0
      %p63 = por %p61, %p62
      %s64 = ssub.s32 %s24, %s31
      %p65 = scmp.eq.s32.totalorder %s64, 0
      %s67 = sadd.s32 %s66, 1
      %s68 = scalar_select %p65, %s66, %s67
      %p71 = pneg %p65
      %p72 = scmp.eq.s32.totalorder %s16, 1
      %p73 = por %p71, %p72
      %p74 = scmp.ne.s32.totalorder %s66, %s69
      %p75 = scmp.eq.s32.totalorder %s16, 0
      %p76 = por %p74, %p75
      %p77 = scmp.ne.s32.totalorder %s66, %s69
      %p78 = scmp.eq.s32.totalorder %s21, 1
      %p79 = por %p77, %p78
      %p80 = scmp.ne.s32.totalorder %s69, %s70
      %p81 = scmp.eq.s32.totalorder %s21, 0
      %p82 = por %p80, %p81
      %p83 = scmp.ne.s32.totalorder %s69, %s70
      %p84 = scmp.eq.s32.totalorder %s22, 1
      %p85 = por %p83, %p84
      %p87 = scmp.ne.s32.totalorder %s70, %s86
      %p88 = scmp.eq.s32.totalorder %s22, 0
      %p89 = por %p87, %p88
      %s90 = ssub.s32 %s24, %s31
      %p91 = scmp.eq.s32.totalorder %s90, 0
      %s93 = sadd.s32 %s92, 1
      %s94 = scalar_select %p91, %s92, %s93
      %p97 = pneg %p91
      %p98 = scmp.eq.s32.totalorder %s16, 1
      %p99 = por %p97, %p98
      %p100 = scmp.ne.s32.totalorder %s92, %s95
      %p101 = scmp.eq.s32.totalorder %s16, 0
      %p102 = por %p100, %p101
      %p103 = scmp.ne.s32.totalorder %s92, %s95
      %p104 = scmp.eq.s32.totalorder %s21, 1
      %p105 = por %p103, %p104
      %p106 = scmp.ne.s32.totalorder %s95, %s96
      %p107 = scmp.eq.s32.totalorder %s21, 0
      %p108 = por %p106, %p107
      %p109 = scmp.ne.s32.totalorder %s95, %s96
      %p110 = scmp.eq.s32.totalorder %s22, 1
      %p111 = por %p109, %p110
      %p113 = scmp.ne.s32.totalorder %s96, %s112
      %p114 = scmp.eq.s32.totalorder %s22, 0
      %p115 = por %p113, %p114
      %s116 = ssub.s32 %s23, %s35
      %s117 = ssub.s32 %s24, %s31
      %s118 = sor.u32 %s116, %s117
      %p119 = scmp.eq.s32.totalorder %s118, 0
      %s121 = sadd.s32 %s120, 1
      %s122 = scalar_select %p119, %s120, %s121
      %p125 = pneg %p119
      %p126 = scmp.eq.s32.totalorder %s16, 1
      %p127 = por %p125, %p126
      %p128 = scmp.ne.s32.totalorder %s120, %s123
      %p129 = scmp.eq.s32.totalorder %s16, 0
      %p130 = por %p128, %p129
      %p131 = scmp.ne.s32.totalorder %s120, %s123
      %p132 = scmp.eq.s32.totalorder %s21, 1
      %p133 = por %p131, %p132
      %p134 = scmp.ne.s32.totalorder %s123, %s124
      %p135 = scmp.eq.s32.totalorder %s21, 0
      %p136 = por %p134, %p135
      %p137 = scmp.ne.s32.totalorder %s123, %s124
      %p138 = scmp.eq.s32.totalorder %s22, 1
      %p139 = por %p137, %p138
      %p141 = scmp.ne.s32.totalorder %s124, %s140
      %p142 = scmp.eq.s32.totalorder %s22, 0
      %p143 = por %p141, %p142
      %p144 = scmp.le.s32.totalorder 1, %s16
      %p145 = scmp.lt.s32.totalorder %s16, 3
      %p146 = pnand %p144, %p145
      %p147 = pneg %p146
      // Predicated region
      $region9: #{tpu_custom_call.1} parent=5 // pred_check
        _
      $region10: #{tpu_custom_call.1} parent=5 // pred_check_branch
        %149 = sbr.rel (%p146) target = $region12
      $region11: #{tpu_custom_call.1} parent=5 // pred_region
        %s150 = ssub.s32 %s16, 1
        // Predicated region
        $region13: #{tpu_custom_call.1} parent=11 // pred_check
          %p151 = pneg %p82
        $region14: #{tpu_custom_call.1} parent=11 // pred_check_branch
          %153 = sbr.rel (%p151) target = $region16
        $region15: #{tpu_custom_call.1} parent=11 // pred_region
          %s155 = ssub.s32 256, 256
          %156 = vsyncadd [#allocation7], %s155
          %s157 = smul.addr %s26, 128
          %s158 = scalar_lea.hbm %s1, %s157
          %s159 = sshll.u32 [#allocation6], 4
          %s160 = int_to_ptr.vmem [resolvable:$true] %s159
          %165 = dma.hbm_to_vmem [thread:$0]  %s158, 256, %s160, [#allocation7], 128, 128, 8
        $region16: #{tpu_custom_call.1} parent=11 // pred_fallthru
          _
        // Predicated region
        $region17: #{tpu_custom_call.1} parent=11 // pred_check
          %p166 = pneg %p108
        $region18: #{tpu_custom_call.1} parent=11 // pred_check_branch
          %168 = sbr.rel (%p166) target = $region20
        $region19: #{tpu_custom_call.1} parent=11 // pred_region
          %p169 = scmp.lt.s32.totalorder %s26, 0
          %s170 = scalar_select %p169, %s26, 0
          %s171 = scalar_lea.vmem %s2, %s170
        $region20: #{tpu_custom_call.1} parent=11 // pred_fallthru
          _
      $region12: #{tpu_custom_call.1} parent=5 // pred_fallthru
        _
      %p172 = scmp.lt.s32.totalorder %s16, 2
      // Predicated region
      $region21: #{tpu_custom_call.1} parent=5 // pred_check
        %p173 = pneg %p172
      $region22: #{tpu_custom_call.1} parent=5 // pred_check_branch
        %175 = sbr.rel (%p173) target = $region24
      $region23: #{tpu_custom_call.1} parent=5 // pred_region
        // Predicated region
        $region25: #{tpu_custom_call.1} parent=23 // pred_check
          %p176 = pneg %p50
        $region26: #{tpu_custom_call.1} parent=23 // pred_check_branch
          %178 = sbr.rel (%p176) target = $region28
        $region27: #{tpu_custom_call.1} parent=23 // pred_region
          %s179 = sand.u32 %s40, 1
          %s180 = scalar_lea.sflag [#allocation4], %s179
          %s181 = sand.u32 %s40, 1
          %s182 = smul.addr %s181, 256
          %s183 = scalar_lea.vmem [#allocation3], %s182
          %s185 = ssub.s32 4096, 4096
          %186 = vsyncadd %s180, %s185
          %s187 = smul.addr %s23, 32
          %s188 = sadd.s32 %s24, %s187
          %s189 = smul.addr %s188, 128
          %s190 = scalar_lea.hbm %s0, %s189
          %s191 = sshll.u32 %s183, 4
          %s192 = int_to_ptr.vmem [resolvable:$true] %s191
          %197 = dma.hbm_to_vmem [thread:$0]  %s190, 4096, %s192, %s180, 128, 128, 8
        $region28: #{tpu_custom_call.1} parent=23 // pred_fallthru
          _
      $region24: #{tpu_custom_call.1} parent=5 // pred_fallthru
        _
      %p198 = scmp.le.s32.totalorder 1, %s16
      %p199 = scmp.lt.s32.totalorder %s16, 3
      %p200 = pnand %p198, %p199
      %p201 = pneg %p200
      // Predicated region
      $region29: #{tpu_custom_call.1} parent=5 // pred_check
        _
      $region30: #{tpu_custom_call.1} parent=5 // pred_check_branch
        %203 = sbr.rel (%p200) target = $region32
      $region31: #{tpu_custom_call.1} parent=5 // pred_region
        %s204 = ssub.s32 %s16, 1
        %s205 = sand.u32 %s43, 1
        %s206 = scalar_lea.sflag [#allocation4], %s205
        %s207 = sand.u32 %s43, 1
        %s208 = smul.addr %s207, 256
        %s209 = scalar_lea.vmem [#allocation3], %s208
        // Predicated region
        $region33: #{tpu_custom_call.1} parent=31 // pred_check
          %p210 = pneg %p56
        $region34: #{tpu_custom_call.1} parent=31 // pred_check_branch
          %212 = sbr.rel (%p210) target = $region36
        $region35: #{tpu_custom_call.1} parent=31 // pred_region
          %213 = dma.done %s206, 4096
        $region36: #{tpu_custom_call.1} parent=31 // pred_fallthru
          _
        // Predicated region
        $region37: #{tpu_custom_call.1} parent=31 // pred_check
          %p214 = pneg %p82
        $region38: #{tpu_custom_call.1} parent=31 // pred_check_branch
          %216 = sbr.rel (%p214) target = $region40
        $region39: #{tpu_custom_call.1} parent=31 // pred_region
          %217 = dma.done [#allocation7], 256
        $region40: #{tpu_custom_call.1} parent=31 // pred_fallthru
          _
        %s218 = sand.u32 %s43, 1
        %s219 = scalar_lea.sflag [#allocation4], %s218
        %s220 = sand.u32 %s43, 1
        %s221 = smul.addr %s220, 256
        %s222 = scalar_lea.vmem [#allocation3], %s221
        %p223 = pneg %p56
        %p224 = pneg %p53
        %p225 = pneg %p82
        %p226 = pneg %p79
        %p227 = scmp.lt.s32.totalorder %s26, 0
        %s228 = scalar_select %p227, %s26, 0
        %s229 = scalar_lea.vmem %s2, %s228
        %p230 = pneg %p108
        %p231 = pneg %p105
        %p232 = pneg %p136
        %p233 = pneg %p133
        %s234 = sand.u32 %s123, 1
        %s235 = scalar_lea.sflag [#allocation5], %s234
        %s236 = sand.u32 %s123, 1
        %s237 = smul.addr %s236, 256
        %s238 = scalar_lea.vmem [#allocation8], %s237
        %p239 = scmp.lt.s32.totalorder %s26, 0
        %s240 = scalar_select %p239, %s26, 0
        %s241 = scalar_lea.vmem %s2, %s240
        %242 = vst [vmem:[#allocation2] sm:$0xff] 0.0
        %243 = vst [vmem:[#allocation2 + $0x8] sm:$0xff] 0.0
        %244 = vst [vmem:[#allocation2 + $0x10] sm:$0x3] 0.0
        %245 = vst [vmem:[#allocation2 + $0x18] sm:$0xff] 0.0
        %246 = vst [vmem:[#allocation2 + $0x20] sm:$0xff] 0.0
        %247 = vst [vmem:[#allocation2 + $0x28] sm:$0x3] 0.0
        %248 = vst [vmem:[#allocation2 + $0x30] sm:$0xff] 0.0
        %249 = vst [vmem:[#allocation2 + $0x38] sm:$0xff] 0.0
        %250 = vst [vmem:[#allocation2 + $0x40] sm:$0x3] 0.0
        %251 = vst [vmem:[#allocation2 + $0x48] sm:$0xff] 0.0
        %252 = vst [vmem:[#allocation2 + $0x50] sm:$0xff] 0.0
        %253 = vst [vmem:[#allocation2 + $0x58] sm:$0x3] 0.0
        %254 = vst [vmem:[#allocation2 + $0x60] sm:$0xff] 0.0
        %255 = vst [vmem:[#allocation2 + $0x68] sm:$0xff] 0.0
        %256 = vst [vmem:[#allocation2 + $0x70] sm:$0x3] 0.0
        %257 = vst [vmem:[#allocation2 + $0x78] sm:$0xff] 0.0
        %258 = vst [vmem:[#allocation2 + $0x80] sm:$0xff] 0.0
        %259 = vst [vmem:[#allocation2 + $0x88] sm:$0x3] 0.0
        %260 = vst [vmem:[#allocation2 + $0x90] sm:$0xff] 0.0
        %261 = vst [vmem:[#allocation2 + $0x98] sm:$0xff] 0.0
        %262 = vst [vmem:[#allocation2 + $0xa0] sm:$0x3] 0.0
        %263 = vst [vmem:[#allocation2 + $0xa8] sm:$0xff] 0.0
        %264 = vst [vmem:[#allocation2 + $0xb0] sm:$0xff] 0.0
        %265 = vst [vmem:[#allocation2 + $0xb8] sm:$0x3] 0.0
        %266 = vst [vmem:[#allocation2 + $0xc0] sm:$0xff] 0.0
        %267 = vst [vmem:[#allocation2 + $0xc8] sm:$0xff] 0.0
        %268 = vst [vmem:[#allocation2 + $0xd0] sm:$0x3] 0.0
        %269 = vst [vmem:[#allocation2 + $0xd8] sm:$0xff] 0.0
        %270 = vst [vmem:[#allocation2 + $0xe0] sm:$0xff] 0.0
        %271 = vst [vmem:[#allocation2 + $0xe8] sm:$0x3] 0.0
        %272 = vst [vmem:[#allocation2 + $0xf0] sm:$0xff] 0.0
        %273 = vst [vmem:[#allocation2 + $0xf8] sm:$0xff] 0.0
        %274 = vst [vmem:[#allocation2 + $0x100] sm:$0x3] 0.0
        %275 = vst [vmem:[#allocation2 + $0x108] sm:$0xff] 0.0
        %276 = vst [vmem:[#allocation2 + $0x110] sm:$0xff] 0.0
        %277 = vst [vmem:[#allocation2 + $0x118] sm:$0x3] 0.0
        %278 = vst [vmem:[#allocation2 + $0x120] sm:$0xff] 0.0
        %279 = vst [vmem:[#allocation2 + $0x128] sm:$0xff] 0.0
        %280 = vst [vmem:[#allocation2 + $0x130] sm:$0x3] 0.0
        %281 = vst [vmem:[#allocation2 + $0x138] sm:$0xff] 0.0
        %282 = vst [vmem:[#allocation2 + $0x140] sm:$0xff] 0.0
        %283 = vst [vmem:[#allocation2 + $0x148] sm:$0x3] 0.0
        %284 = vst [vmem:[#allocation2 + $0x150] sm:$0xff] 0.0
        %285 = vst [vmem:[#allocation2 + $0x158] sm:$0xff] 0.0
        %286 = vst [vmem:[#allocation2 + $0x160] sm:$0x3] 0.0
        %287 = vst [vmem:[#allocation2 + $0x168] sm:$0xff] 0.0
        %288 = vst [vmem:[#allocation2 + $0x170] sm:$0xff] 0.0
        %289 = vst [vmem:[#allocation2 + $0x178] sm:$0x3] 0.0
        %290 = vst [vmem:[#allocation2 + $0x180] sm:$0xff] 0.0
        %291 = vst [vmem:[#allocation2 + $0x188] sm:$0xff] 0.0
        %292 = vst [vmem:[#allocation2 + $0x190] sm:$0x3] 0.0
        %293 = vst [vmem:[#allocation2 + $0x198] sm:$0xff] 0.0
        %294 = vst [vmem:[#allocation2 + $0x1a0] sm:$0xff] 0.0
        %295 = vst [vmem:[#allocation2 + $0x1a8] sm:$0x3] 0.0
        %v296 = vld [vmem:[%s209] sm:$0xff]
        %v297 = vld [vmem:[%s209 + $0x8] sm:$0xff]
        %v298 = vld [vmem:[%s209 + $0x10] sm:$0xff]
        %v299 = vld [vmem:[%s209 + $0x18] sm:$0xff]
        %v300 = vld [vmem:[%s209 + $0x20] sm:$0xff]
        %v301 = vld [vmem:[%s209 + $0x28] sm:$0xff]
        %v302 = vld [vmem:[%s209 + $0x30] sm:$0xff]
        %v303 = vld [vmem:[%s209 + $0x38] sm:$0xff]
        %v304 = vld [vmem:[%s209 + $0x40] sm:$0xff]
        %v305 = vld [vmem:[%s209 + $0x48] sm:$0xff]
        %v306 = vld [vmem:[%s209 + $0x50] sm:$0xff]
        %v307 = vld [vmem:[%s209 + $0x58] sm:$0xff]
        %v308 = vld [vmem:[%s209 + $0x60] sm:$0xff]
        %v309 = vld [vmem:[%s209 + $0x68] sm:$0xff]
        %v310 = vld [vmem:[%s209 + $0x70] sm:$0xff]
        %v311 = vld [vmem:[%s209 + $0x78] sm:$0xff]
        %v312 = vld [vmem:[%s209 + $0x80] sm:$0xff]
        %v313 = vld [vmem:[%s209 + $0x88] sm:$0xff]
        %v314 = vld [vmem:[%s209 + $0x90] sm:$0xff]
        %v315 = vld [vmem:[%s209 + $0x98] sm:$0xff]
        %v316 = vld [vmem:[%s209 + $0xa0] sm:$0xff]
        %v317 = vld [vmem:[%s209 + $0xa8] sm:$0xff]
        %v318 = vld [vmem:[%s209 + $0xb0] sm:$0xff]
        %v319 = vld [vmem:[%s209 + $0xb8] sm:$0xff]
        %v320 = vld [vmem:[%s209 + $0xc0] sm:$0xff]
        %v321 = vld [vmem:[%s209 + $0xc8] sm:$0xff]
        %v322 = vld [vmem:[%s209 + $0xd0] sm:$0xff]
        %v323 = vld [vmem:[%s209 + $0xd8] sm:$0xff]
        %v324 = vld [vmem:[%s209 + $0xe0] sm:$0xff]
        %v325 = vld [vmem:[%s209 + $0xe8] sm:$0xff]
        %v326 = vld [vmem:[%s209 + $0xf0] sm:$0xff]
        %v327 = vld [vmem:[%s209 + $0xf8] sm:$0xff]
        %s328 = scalar_lea.vmem [#allocation2], 24
        %329 = vst [vmem:[%s328 + $0x1] sm:$0xff] %v296
        %330 = vst [vmem:[%s328 + $0x9] sm:$0xff] %v297
        %331 = vst [vmem:[%s328 + $0x19] sm:$0xff] %v298
        %332 = vst [vmem:[%s328 + $0x21] sm:$0xff] %v299
        %333 = vst [vmem:[%s328 + $0x31] sm:$0xff] %v300
        %334 = vst [vmem:[%s328 + $0x39] sm:$0xff] %v301
        %335 = vst [vmem:[%s328 + $0x49] sm:$0xff] %v302
        %336 = vst [vmem:[%s328 + $0x51] sm:$0xff] %v303
        %337 = vst [vmem:[%s328 + $0x61] sm:$0xff] %v304
        %338 = vst [vmem:[%s328 + $0x69] sm:$0xff] %v305
        %339 = vst [vmem:[%s328 + $0x79] sm:$0xff] %v306
        %340 = vst [vmem:[%s328 + $0x81] sm:$0xff] %v307
        %341 = vst [vmem:[%s328 + $0x91] sm:$0xff] %v308
        %342 = vst [vmem:[%s328 + $0x99] sm:$0xff] %v309
        %343 = vst [vmem:[%s328 + $0xa9] sm:$0xff] %v310
        %344 = vst [vmem:[%s328 + $0xb1] sm:$0xff] %v311
        %345 = vst [vmem:[%s328 + $0xc1] sm:$0xff] %v312
        %346 = vst [vmem:[%s328 + $0xc9] sm:$0xff] %v313
        %347 = vst [vmem:[%s328 + $0xd9] sm:$0xff] %v314
        %348 = vst [vmem:[%s328 + $0xe1] sm:$0xff] %v315
        %349 = vst [vmem:[%s328 + $0xf1] sm:$0xff] %v316
        %350 = vst [vmem:[%s328 + $0xf9] sm:$0xff] %v317
        %351 = vst [vmem:[%s328 + $0x109] sm:$0xff] %v318
        %352 = vst [vmem:[%s328 + $0x111] sm:$0xff] %v319
        %353 = vst [vmem:[%s328 + $0x121] sm:$0xff] %v320
        %354 = vst [vmem:[%s328 + $0x129] sm:$0xff] %v321
        %355 = vst [vmem:[%s328 + $0x139] sm:$0xff] %v322
        %356 = vst [vmem:[%s328 + $0x141] sm:$0xff] %v323
        %357 = vst [vmem:[%s328 + $0x151] sm:$0xff] %v324
        %358 = vst [vmem:[%s328 + $0x159] sm:$0xff] %v325
        %359 = vst [vmem:[%s328 + $0x169] sm:$0xff] %v326
        %360 = vst [vmem:[%s328 + $0x171] sm:$0xff] %v327
        %v361 = vld [vmem:[#allocation6] sm:$0xff]
        %v362 = vld [vmem:[#allocation6 + $0x8] sm:$0x1]
        %v363 = vld [vmem:[%s241] sm:$0x1]
        %v364 = vld [vmem:[#allocation2] sm:$0xff]
        %v365 = vld [vmem:[#allocation2 + $0x8] sm:$0xff]
        %v366 = vld [vmem:[#allocation2 + $0x18] sm:$0xff]
        %v367 = vld [vmem:[#allocation2 + $0x20] sm:$0xff]
        %v368 = vld [vmem:[#allocation2 + $0x30] sm:$0xff]
        %v369 = vld [vmem:[#allocation2 + $0x38] sm:$0xff]
        %v370 = vld [vmem:[#allocation2 + $0x48] sm:$0xff]
        %v371 = vld [vmem:[#allocation2 + $0x50] sm:$0xff]
        %v372 = vld [vmem:[#allocation2 + $0x60] sm:$0xff]
        %v373 = vld [vmem:[#allocation2 + $0x68] sm:$0xff]
        %v374 = vld [vmem:[#allocation2 + $0x78] sm:$0xff]
        %v375 = vld [vmem:[#allocation2 + $0x80] sm:$0xff]
        %v376 = vld [vmem:[#allocation2 + $0x90] sm:$0xff]
        %v377 = vld [vmem:[#allocation2 + $0x98] sm:$0xff]
        %v378 = vld [vmem:[#allocation2 + $0xa8] sm:$0xff]
        %v379 = vld [vmem:[#allocation2 + $0xb0] sm:$0xff]
        %v380 = vld [vmem:[#allocation2 + $0xc0] sm:$0xff]
        %v381 = vld [vmem:[#allocation2 + $0xc8] sm:$0xff]
        %v382 = vld [vmem:[#allocation2 + $0xd8] sm:$0xff]
        %v383 = vld [vmem:[#allocation2 + $0xe0] sm:$0xff]
        %v384 = vld [vmem:[#allocation2 + $0xf0] sm:$0xff]
        %v385 = vld [vmem:[#allocation2 + $0xf8] sm:$0xff]
        %v386 = vld [vmem:[#allocation2 + $0x108] sm:$0xff]
        %v387 = vld [vmem:[#allocation2 + $0x110] sm:$0xff]
        %v388 = vld [vmem:[#allocation2 + $0x120] sm:$0xff]
        %v389 = vld [vmem:[#allocation2 + $0x128] sm:$0xff]
        %v390 = vld [vmem:[#allocation2 + $0x138] sm:$0xff]
        %v391 = vld [vmem:[#allocation2 + $0x140] sm:$0xff]
        %v392 = vld [vmem:[#allocation2 + $0x150] sm:$0xff]
        %v393 = vld [vmem:[#allocation2 + $0x158] sm:$0xff]
        %v394 = vld [vmem:[#allocation2 + $0x168] sm:$0xff]
        %v395 = vld [vmem:[#allocation2 + $0x170] sm:$0xff]
        %v396 = vld [vmem:[#allocation2 + $0x180] sm:$0xff]
        %v397 = vld [vmem:[#allocation2 + $0x188] sm:$0xff]
        %v398 = vld [vmem:[#allocation2 + $0x198] sm:$0xff]
        %v399 = vld [vmem:[#allocation2 + $0x1a0] sm:$0xff]
        %v400 = vlaneseq
        %v401 = vshrl.u32 %v400, 7
        %v402 = vsub.s32 0, %v401
        %v403 = vrot.slane %v361, %v402
        %v404 = vmul.f32 %v364, %v403
        %v405 = vmul.f32 %v365, %v403
        %v406 = vmul.f32 %v366, %v403
        %v407 = vmul.f32 %v367, %v403
        %v408 = vmul.f32 %v368, %v403
        %v409 = vmul.f32 %v369, %v403
        %v410 = vmul.f32 %v370, %v403
        %v411 = vmul.f32 %v371, %v403
        %v412 = vmul.f32 %v372, %v403
        %v413 = vmul.f32 %v373, %v403
        %v414 = vmul.f32 %v374, %v403
        %v415 = vmul.f32 %v375, %v403
        %v416 = vmul.f32 %v376, %v403
        %v417 = vmul.f32 %v377, %v403
        %v418 = vmul.f32 %v378, %v403
        %v419 = vmul.f32 %v379, %v403
        %v420 = vmul.f32 %v380, %v403
        %v421 = vmul.f32 %v381, %v403
        %v422 = vmul.f32 %v382, %v403
        %v423 = vmul.f32 %v383, %v403
        %v424 = vmul.f32 %v384, %v403
        %v425 = vmul.f32 %v385, %v403
        %v426 = vmul.f32 %v386, %v403
        %v427 = vmul.f32 %v387, %v403
        %v428 = vmul.f32 %v388, %v403
        %v429 = vmul.f32 %v389, %v403
        %v430 = vmul.f32 %v390, %v403
        %v431 = vmul.f32 %v391, %v403
        %v432 = vmul.f32 %v392, %v403
        %v433 = vmul.f32 %v393, %v403
        %v434 = vmul.f32 %v394, %v403
        %v435 = vmul.f32 %v395, %v403
        %v436 = vadd.f32 %v404, 0.0
        %v437 = vadd.f32 %v405, 0.0
        %v438 = vadd.f32 %v406, 0.0
        %v439 = vadd.f32 %v407, 0.0
        %v440 = vadd.f32 %v408, 0.0
        %v441 = vadd.f32 %v409, 0.0
        %v442 = vadd.f32 %v410, 0.0
        %v443 = vadd.f32 %v411, 0.0
        %v444 = vadd.f32 %v412, 0.0
        %v445 = vadd.f32 %v413, 0.0
        %v446 = vadd.f32 %v414, 0.0
        %v447 = vadd.f32 %v415, 0.0
        %v448 = vadd.f32 %v416, 0.0
        %v449 = vadd.f32 %v417, 0.0
        %v450 = vadd.f32 %v418, 0.0
        %v451 = vadd.f32 %v419, 0.0
        %v452 = vadd.f32 %v420, 0.0
        %v453 = vadd.f32 %v421, 0.0
        %v454 = vadd.f32 %v422, 0.0
        %v455 = vadd.f32 %v423, 0.0
        %v456 = vadd.f32 %v424, 0.0
        %v457 = vadd.f32 %v425, 0.0
        %v458 = vadd.f32 %v426, 0.0
        %v459 = vadd.f32 %v427, 0.0
        %v460 = vadd.f32 %v428, 0.0
        %v461 = vadd.f32 %v429, 0.0
        %v462 = vadd.f32 %v430, 0.0
        %v463 = vadd.f32 %v431, 0.0
        %v464 = vadd.f32 %v432, 0.0
        %v465 = vadd.f32 %v433, 0.0
        %v466 = vadd.f32 %v434, 0.0
        %v467 = vadd.f32 %v435, 0.0
        %v468 = vlaneseq
        %v469 = vshrl.u32 %v468, 7
        %v470 = vsub.s32 3, %v469
        %v471 = vrot.slane %v361, %v470
        %v472 = vmul.f32 %v366, %v471
        %v473 = vmul.f32 %v367, %v471
        %v474 = vmul.f32 %v368, %v471
        %v475 = vmul.f32 %v369, %v471
        %v476 = vmul.f32 %v370, %v471
        %v477 = vmul.f32 %v371, %v471
        %v478 = vmul.f32 %v372, %v471
        %v479 = vmul.f32 %v373, %v471
        %v480 = vmul.f32 %v374, %v471
        %v481 = vmul.f32 %v375, %v471
        %v482 = vmul.f32 %v376, %v471
        %v483 = vmul.f32 %v377, %v471
        %v484 = vmul.f32 %v378, %v471
        %v485 = vmul.f32 %v379, %v471
        %v486 = vmul.f32 %v380, %v471
        %v487 = vmul.f32 %v381, %v471
        %v488 = vmul.f32 %v382, %v471
        %v489 = vmul.f32 %v383, %v471
        %v490 = vmul.f32 %v384, %v471
        %v491 = vmul.f32 %v385, %v471
        %v492 = vmul.f32 %v386, %v471
        %v493 = vmul.f32 %v387, %v471
        %v494 = vmul.f32 %v388, %v471
        %v495 = vmul.f32 %v389, %v471
        %v496 = vmul.f32 %v390, %v471
        %v497 = vmul.f32 %v391, %v471
        %v498 = vmul.f32 %v392, %v471
        %v499 = vmul.f32 %v393, %v471
        %v500 = vmul.f32 %v394, %v471
        %v501 = vmul.f32 %v395, %v471
        %v502 = vmul.f32 %v396, %v471
        %v503 = vmul.f32 %v397, %v471
        %v504 = vadd.f32 %v436, %v472
        %v505 = vadd.f32 %v437, %v473
        %v506 = vadd.f32 %v438, %v474
        %v507 = vadd.f32 %v439, %v475
        %v508 = vadd.f32 %v440, %v476
        %v509 = vadd.f32 %v441, %v477
        %v510 = vadd.f32 %v442, %v478
        %v511 = vadd.f32 %v443, %v479
        %v512 = vadd.f32 %v444, %v480
        %v513 = vadd.f32 %v445, %v481
        %v514 = vadd.f32 %v446, %v482
        %v515 = vadd.f32 %v447, %v483
        %v516 = vadd.f32 %v448, %v484
        %v517 = vadd.f32 %v449, %v485
        %v518 = vadd.f32 %v450, %v486
        %v519 = vadd.f32 %v451, %v487
        %v520 = vadd.f32 %v452, %v488
        %v521 = vadd.f32 %v453, %v489
        %v522 = vadd.f32 %v454, %v490
        %v523 = vadd.f32 %v455, %v491
        %v524 = vadd.f32 %v456, %v492
        %v525 = vadd.f32 %v457, %v493
        %v526 = vadd.f32 %v458, %v494
        %v527 = vadd.f32 %v459, %v495
        %v528 = vadd.f32 %v460, %v496
        %v529 = vadd.f32 %v461, %v497
        %v530 = vadd.f32 %v462, %v498
        %v531 = vadd.f32 %v463, %v499
        %v532 = vadd.f32 %v464, %v500
        %v533 = vadd.f32 %v465, %v501
        %v534 = vadd.f32 %v466, %v502
        %v535 = vadd.f32 %v467, %v503
        %v536 = vlaneseq
        %v537 = vshrl.u32 %v536, 7
        %v538 = vsub.s32 6, %v537
        %v539 = vrot.slane %v361, %v538
        %v540 = vmul.f32 %v368, %v539
        %v541 = vmul.f32 %v369, %v539
        %v542 = vmul.f32 %v370, %v539
        %v543 = vmul.f32 %v371, %v539
        %v544 = vmul.f32 %v372, %v539
        %v545 = vmul.f32 %v373, %v539
        %v546 = vmul.f32 %v374, %v539
        %v547 = vmul.f32 %v375, %v539
        %v548 = vmul.f32 %v376, %v539
        %v549 = vmul.f32 %v377, %v539
        %v550 = vmul.f32 %v378, %v539
        %v551 = vmul.f32 %v379, %v539
        %v552 = vmul.f32 %v380, %v539
        %v553 = vmul.f32 %v381, %v539
        %v554 = vmul.f32 %v382, %v539
        %v555 = vmul.f32 %v383, %v539
        %v556 = vmul.f32 %v384, %v539
        %v557 = vmul.f32 %v385, %v539
        %v558 = vmul.f32 %v386, %v539
        %v559 = vmul.f32 %v387, %v539
        %v560 = vmul.f32 %v388, %v539
        %v561 = vmul.f32 %v389, %v539
        %v562 = vmul.f32 %v390, %v539
        %v563 = vmul.f32 %v391, %v539
        %v564 = vmul.f32 %v392, %v539
        %v565 = vmul.f32 %v393, %v539
        %v566 = vmul.f32 %v394, %v539
        %v567 = vmul.f32 %v395, %v539
        %v568 = vmul.f32 %v396, %v539
        %v569 = vmul.f32 %v397, %v539
        %v570 = vmul.f32 %v398, %v539
        %v571 = vmul.f32 %v399, %v539
        %v572 = vadd.f32 %v504, %v540
        %v573 = vadd.f32 %v505, %v541
        %v574 = vadd.f32 %v506, %v542
        %v575 = vadd.f32 %v507, %v543
        %v576 = vadd.f32 %v508, %v544
        %v577 = vadd.f32 %v509, %v545
        %v578 = vadd.f32 %v510, %v546
        %v579 = vadd.f32 %v511, %v547
        %v580 = vadd.f32 %v512, %v548
        %v581 = vadd.f32 %v513, %v549
        %v582 = vadd.f32 %v514, %v550
        %v583 = vadd.f32 %v515, %v551
        %v584 = vadd.f32 %v516, %v552
        %v585 = vadd.f32 %v517, %v553
        %v586 = vadd.f32 %v518, %v554
        %v587 = vadd.f32 %v519, %v555
        %v588 = vadd.f32 %v520, %v556
        %v589 = vadd.f32 %v521, %v557
        %v590 = vadd.f32 %v522, %v558
        %v591 = vadd.f32 %v523, %v559
        %v592 = vadd.f32 %v524, %v560
        %v593 = vadd.f32 %v525, %v561
        %v594 = vadd.f32 %v526, %v562
        %v595 = vadd.f32 %v527, %v563
        %v596 = vadd.f32 %v528, %v564
        %v597 = vadd.f32 %v529, %v565
        %v598 = vadd.f32 %v530, %v566
        %v599 = vadd.f32 %v531, %v567
        %v600 = vadd.f32 %v532, %v568
        %v601 = vadd.f32 %v533, %v569
        %v602 = vadd.f32 %v534, %v570
        %v603 = vadd.f32 %v535, %v571
        %v604 = vld [vmem:[#allocation2 + $0x1] sm:$0xff]
        %v605 = vld [vmem:[#allocation2 + $0x9] sm:$0xff]
        %v606 = vld [vmem:[#allocation2 + $0x19] sm:$0xff]
        %v607 = vld [vmem:[#allocation2 + $0x21] sm:$0xff]
        %v608 = vld [vmem:[#allocation2 + $0x31] sm:$0xff]
        %v609 = vld [vmem:[#allocation2 + $0x39] sm:$0xff]
        %v610 = vld [vmem:[#allocation2 + $0x49] sm:$0xff]
        %v611 = vld [vmem:[#allocation2 + $0x51] sm:$0xff]
        %v612 = vld [vmem:[#allocation2 + $0x61] sm:$0xff]
        %v613 = vld [vmem:[#allocation2 + $0x69] sm:$0xff]
        %v614 = vld [vmem:[#allocation2 + $0x79] sm:$0xff]
        %v615 = vld [vmem:[#allocation2 + $0x81] sm:$0xff]
        %v616 = vld [vmem:[#allocation2 + $0x91] sm:$0xff]
        %v617 = vld [vmem:[#allocation2 + $0x99] sm:$0xff]
        %v618 = vld [vmem:[#allocation2 + $0xa9] sm:$0xff]
        %v619 = vld [vmem:[#allocation2 + $0xb1] sm:$0xff]
        %v620 = vld [vmem:[#allocation2 + $0xc1] sm:$0xff]
        %v621 = vld [vmem:[#allocation2 + $0xc9] sm:$0xff]
        %v622 = vld [vmem:[#allocation2 + $0xd9] sm:$0xff]
        %v623 = vld [vmem:[#allocation2 + $0xe1] sm:$0xff]
        %v624 = vld [vmem:[#allocation2 + $0xf1] sm:$0xff]
        %v625 = vld [vmem:[#allocation2 + $0xf9] sm:$0xff]
        %v626 = vld [vmem:[#allocation2 + $0x109] sm:$0xff]
        %v627 = vld [vmem:[#allocation2 + $0x111] sm:$0xff]
        %v628 = vld [vmem:[#allocation2 + $0x121] sm:$0xff]
        %v629 = vld [vmem:[#allocation2 + $0x129] sm:$0xff]
        %v630 = vld [vmem:[#allocation2 + $0x139] sm:$0xff]
        %v631 = vld [vmem:[#allocation2 + $0x141] sm:$0xff]
        %v632 = vld [vmem:[#allocation2 + $0x151] sm:$0xff]
        %v633 = vld [vmem:[#allocation2 + $0x159] sm:$0xff]
        %v634 = vld [vmem:[#allocation2 + $0x169] sm:$0xff]
        %v635 = vld [vmem:[#allocation2 + $0x171] sm:$0xff]
        %v636 = vld [vmem:[#allocation2 + $0x181] sm:$0xff]
        %v637 = vld [vmem:[#allocation2 + $0x189] sm:$0xff]
        %v638 = vld [vmem:[#allocation2 + $0x199] sm:$0xff]
        %v639 = vld [vmem:[#allocation2 + $0x1a1] sm:$0xff]
        %v640 = vlaneseq
        %v641 = vshrl.u32 %v640, 7
        %v642 = vsub.s32 1, %v641
        %v643 = vrot.slane %v361, %v642
        %v644 = vmul.f32 %v604, %v643
        %v645 = vmul.f32 %v605, %v643
        %v646 = vmul.f32 %v606, %v643
        %v647 = vmul.f32 %v607, %v643
        %v648 = vmul.f32 %v608, %v643
        %v649 = vmul.f32 %v609, %v643
        %v650 = vmul.f32 %v610, %v643
        %v651 = vmul.f32 %v611, %v643
        %v652 = vmul.f32 %v612, %v643
        %v653 = vmul.f32 %v613, %v643
        %v654 = vmul.f32 %v614, %v643
        %v655 = vmul.f32 %v615, %v643
        %v656 = vmul.f32 %v616, %v643
        %v657 = vmul.f32 %v617, %v643
        %v658 = vmul.f32 %v618, %v643
        %v659 = vmul.f32 %v619, %v643
        %v660 = vmul.f32 %v620, %v643
        %v661 = vmul.f32 %v621, %v643
        %v662 = vmul.f32 %v622, %v643
        %v663 = vmul.f32 %v623, %v643
        %v664 = vmul.f32 %v624, %v643
        %v665 = vmul.f32 %v625, %v643
        %v666 = vmul.f32 %v626, %v643
        %v667 = vmul.f32 %v627, %v643
        %v668 = vmul.f32 %v628, %v643
        %v669 = vmul.f32 %v629, %v643
        %v670 = vmul.f32 %v630, %v643
        %v671 = vmul.f32 %v631, %v643
        %v672 = vmul.f32 %v632, %v643
        %v673 = vmul.f32 %v633, %v643
        %v674 = vmul.f32 %v634, %v643
        %v675 = vmul.f32 %v635, %v643
        %v676 = vadd.f32 %v572, %v644
        %v677 = vadd.f32 %v573, %v645
        %v678 = vadd.f32 %v574, %v646
        %v679 = vadd.f32 %v575, %v647
        %v680 = vadd.f32 %v576, %v648
        %v681 = vadd.f32 %v577, %v649
        %v682 = vadd.f32 %v578, %v650
        %v683 = vadd.f32 %v579, %v651
        %v684 = vadd.f32 %v580, %v652
        %v685 = vadd.f32 %v581, %v653
        %v686 = vadd.f32 %v582, %v654
        %v687 = vadd.f32 %v583, %v655
        %v688 = vadd.f32 %v584, %v656
        %v689 = vadd.f32 %v585, %v657
        %v690 = vadd.f32 %v586, %v658
        %v691 = vadd.f32 %v587, %v659
        %v692 = vadd.f32 %v588, %v660
        %v693 = vadd.f32 %v589, %v661
        %v694 = vadd.f32 %v590, %v662
        %v695 = vadd.f32 %v591, %v663
        %v696 = vadd.f32 %v592, %v664
        %v697 = vadd.f32 %v593, %v665
        %v698 = vadd.f32 %v594, %v666
        %v699 = vadd.f32 %v595, %v667
        %v700 = vadd.f32 %v596, %v668
        %v701 = vadd.f32 %v597, %v669
        %v702 = vadd.f32 %v598, %v670
        %v703 = vadd.f32 %v599, %v671
        %v704 = vadd.f32 %v600, %v672
        %v705 = vadd.f32 %v601, %v673
        %v706 = vadd.f32 %v602, %v674
        %v707 = vadd.f32 %v603, %v675
        %v708 = vlaneseq
        %v709 = vshrl.u32 %v708, 7
        %v710 = vsub.s32 4, %v709
        %v711 = vrot.slane %v361, %v710
        %v712 = vmul.f32 %v606, %v711
        %v713 = vmul.f32 %v607, %v711
        %v714 = vmul.f32 %v608, %v711
        %v715 = vmul.f32 %v609, %v711
        %v716 = vmul.f32 %v610, %v711
        %v717 = vmul.f32 %v611, %v711
        %v718 = vmul.f32 %v612, %v711
        %v719 = vmul.f32 %v613, %v711
        %v720 = vmul.f32 %v614, %v711
        %v721 = vmul.f32 %v615, %v711
        %v722 = vmul.f32 %v616, %v711
        %v723 = vmul.f32 %v617, %v711
        %v724 = vmul.f32 %v618, %v711
        %v725 = vmul.f32 %v619, %v711
        %v726 = vmul.f32 %v620, %v711
        %v727 = vmul.f32 %v621, %v711
        %v728 = vmul.f32 %v622, %v711
        %v729 = vmul.f32 %v623, %v711
        %v730 = vmul.f32 %v624, %v711
        %v731 = vmul.f32 %v625, %v711
        %v732 = vmul.f32 %v626, %v711
        %v733 = vmul.f32 %v627, %v711
        %v734 = vmul.f32 %v628, %v711
        %v735 = vmul.f32 %v629, %v711
        %v736 = vmul.f32 %v630, %v711
        %v737 = vmul.f32 %v631, %v711
        %v738 = vmul.f32 %v632, %v711
        %v739 = vmul.f32 %v633, %v711
        %v740 = vmul.f32 %v634, %v711
        %v741 = vmul.f32 %v635, %v711
        %v742 = vmul.f32 %v636, %v711
        %v743 = vmul.f32 %v637, %v711
        %v744 = vadd.f32 %v676, %v712
        %v745 = vadd.f32 %v677, %v713
        %v746 = vadd.f32 %v678, %v714
        %v747 = vadd.f32 %v679, %v715
        %v748 = vadd.f32 %v680, %v716
        %v749 = vadd.f32 %v681, %v717
        %v750 = vadd.f32 %v682, %v718
        %v751 = vadd.f32 %v683, %v719
        %v752 = vadd.f32 %v684, %v720
        %v753 = vadd.f32 %v685, %v721
        %v754 = vadd.f32 %v686, %v722
        %v755 = vadd.f32 %v687, %v723
        %v756 = vadd.f32 %v688, %v724
        %v757 = vadd.f32 %v689, %v725
        %v758 = vadd.f32 %v690, %v726
        %v759 = vadd.f32 %v691, %v727
        %v760 = vadd.f32 %v692, %v728
        %v761 = vadd.f32 %v693, %v729
        %v762 = vadd.f32 %v694, %v730
        %v763 = vadd.f32 %v695, %v731
        %v764 = vadd.f32 %v696, %v732
        %v765 = vadd.f32 %v697, %v733
        %v766 = vadd.f32 %v698, %v734
        %v767 = vadd.f32 %v699, %v735
        %v768 = vadd.f32 %v700, %v736
        %v769 = vadd.f32 %v701, %v737
        %v770 = vadd.f32 %v702, %v738
        %v771 = vadd.f32 %v703, %v739
        %v772 = vadd.f32 %v704, %v740
        %v773 = vadd.f32 %v705, %v741
        %v774 = vadd.f32 %v706, %v742
        %v775 = vadd.f32 %v707, %v743
        %v776 = vlaneseq
        %v777 = vshrl.u32 %v776, 7
        %v778 = vsub.s32 7, %v777
        %v779 = vrot.slane %v361, %v778
        %v780 = vmul.f32 %v608, %v779
        %v781 = vmul.f32 %v609, %v779
        %v782 = vmul.f32 %v610, %v779
        %v783 = vmul.f32 %v611, %v779
        %v784 = vmul.f32 %v612, %v779
        %v785 = vmul.f32 %v613, %v779
        %v786 = vmul.f32 %v614, %v779
        %v787 = vmul.f32 %v615, %v779
        %v788 = vmul.f32 %v616, %v779
        %v789 = vmul.f32 %v617, %v779
        %v790 = vmul.f32 %v618, %v779
        %v791 = vmul.f32 %v619, %v779
        %v792 = vmul.f32 %v620, %v779
        %v793 = vmul.f32 %v621, %v779
        %v794 = vmul.f32 %v622, %v779
        %v795 = vmul.f32 %v623, %v779
        %v796 = vmul.f32 %v624, %v779
        %v797 = vmul.f32 %v625, %v779
        %v798 = vmul.f32 %v626, %v779
        %v799 = vmul.f32 %v627, %v779
        %v800 = vmul.f32 %v628, %v779
        %v801 = vmul.f32 %v629, %v779
        %v802 = vmul.f32 %v630, %v779
        %v803 = vmul.f32 %v631, %v779
        %v804 = vmul.f32 %v632, %v779
        %v805 = vmul.f32 %v633, %v779
        %v806 = vmul.f32 %v634, %v779
        %v807 = vmul.f32 %v635, %v779
        %v808 = vmul.f32 %v636, %v779
        %v809 = vmul.f32 %v637, %v779
        %v810 = vmul.f32 %v638, %v779
        %v811 = vmul.f32 %v639, %v779
        %v812 = vadd.f32 %v744, %v780
        %v813 = vadd.f32 %v745, %v781
        %v814 = vadd.f32 %v746, %v782
        %v815 = vadd.f32 %v747, %v783
        %v816 = vadd.f32 %v748, %v784
        %v817 = vadd.f32 %v749, %v785
        %v818 = vadd.f32 %v750, %v786
        %v819 = vadd.f32 %v751, %v787
        %v820 = vadd.f32 %v752, %v788
        %v821 = vadd.f32 %v753, %v789
        %v822 = vadd.f32 %v754, %v790
        %v823 = vadd.f32 %v755, %v791
        %v824 = vadd.f32 %v756, %v792
        %v825 = vadd.f32 %v757, %v793
        %v826 = vadd.f32 %v758, %v794
        %v827 = vadd.f32 %v759, %v795
        %v828 = vadd.f32 %v760, %v796
        %v829 = vadd.f32 %v761, %v797
        %v830 = vadd.f32 %v762, %v798
        %v831 = vadd.f32 %v763, %v799
        %v832 = vadd.f32 %v764, %v800
        %v833 = vadd.f32 %v765, %v801
        %v834 = vadd.f32 %v766, %v802
        %v835 = vadd.f32 %v767, %v803
        %v836 = vadd.f32 %v768, %v804
        %v837 = vadd.f32 %v769, %v805
        %v838 = vadd.f32 %v770, %v806
        %v839 = vadd.f32 %v771, %v807
        %v840 = vadd.f32 %v772, %v808
        %v841 = vadd.f32 %v773, %v809
        %v842 = vadd.f32 %v774, %v810
        %v843 = vadd.f32 %v775, %v811
        %v844 = vld [vmem:[#allocation2 + $0x2] sm:$0xff]
        %v845 = vld [vmem:[#allocation2 + $0xa] sm:$0xff]
        %v846 = vld [vmem:[#allocation2 + $0x1a] sm:$0xff]
        %v847 = vld [vmem:[#allocation2 + $0x22] sm:$0xff]
        %v848 = vld [vmem:[#allocation2 + $0x32] sm:$0xff]
        %v849 = vld [vmem:[#allocation2 + $0x3a] sm:$0xff]
        %v850 = vld [vmem:[#allocation2 + $0x4a] sm:$0xff]
        %v851 = vld [vmem:[#allocation2 + $0x52] sm:$0xff]
        %v852 = vld [vmem:[#allocation2 + $0x62] sm:$0xff]
        %v853 = vld [vmem:[#allocation2 + $0x6a] sm:$0xff]
        %v854 = vld [vmem:[#allocation2 + $0x7a] sm:$0xff]
        %v855 = vld [vmem:[#allocation2 + $0x82] sm:$0xff]
        %v856 = vld [vmem:[#allocation2 + $0x92] sm:$0xff]
        %v857 = vld [vmem:[#allocation2 + $0x9a] sm:$0xff]
        %v858 = vld [vmem:[#allocation2 + $0xaa] sm:$0xff]
        %v859 = vld [vmem:[#allocation2 + $0xb2] sm:$0xff]
        %v860 = vld [vmem:[#allocation2 + $0xc2] sm:$0xff]
        %v861 = vld [vmem:[#allocation2 + $0xca] sm:$0xff]
        %v862 = vld [vmem:[#allocation2 + $0xda] sm:$0xff]
        %v863 = vld [vmem:[#allocation2 + $0xe2] sm:$0xff]
        %v864 = vld [vmem:[#allocation2 + $0xf2] sm:$0xff]
        %v865 = vld [vmem:[#allocation2 + $0xfa] sm:$0xff]
        %v866 = vld [vmem:[#allocation2 + $0x10a] sm:$0xff]
        %v867 = vld [vmem:[#allocation2 + $0x112] sm:$0xff]
        %v868 = vld [vmem:[#allocation2 + $0x122] sm:$0xff]
        %v869 = vld [vmem:[#allocation2 + $0x12a] sm:$0xff]
        %v870 = vld [vmem:[#allocation2 + $0x13a] sm:$0xff]
        %v871 = vld [vmem:[#allocation2 + $0x142] sm:$0xff]
        %v872 = vld [vmem:[#allocation2 + $0x152] sm:$0xff]
        %v873 = vld [vmem:[#allocation2 + $0x15a] sm:$0xff]
        %v874 = vld [vmem:[#allocation2 + $0x16a] sm:$0xff]
        %v875 = vld [vmem:[#allocation2 + $0x172] sm:$0xff]
        %v876 = vld [vmem:[#allocation2 + $0x182] sm:$0xff]
        %v877 = vld [vmem:[#allocation2 + $0x18a] sm:$0xff]
        %v878 = vld [vmem:[#allocation2 + $0x19a] sm:$0xff]
        %v879 = vld [vmem:[#allocation2 + $0x1a2] sm:$0xff]
        %v880 = vlaneseq
        %v881 = vshrl.u32 %v880, 7
        %v882 = vsub.s32 2, %v881
        %v883 = vrot.slane %v361, %v882
        %v884 = vmul.f32 %v844, %v883
        %v885 = vmul.f32 %v845, %v883
        %v886 = vmul.f32 %v846, %v883
        %v887 = vmul.f32 %v847, %v883
        %v888 = vmul.f32 %v848, %v883
        %v889 = vmul.f32 %v849, %v883
        %v890 = vmul.f32 %v850, %v883
        %v891 = vmul.f32 %v851, %v883
        %v892 = vmul.f32 %v852, %v883
        %v893 = vmul.f32 %v853, %v883
        %v894 = vmul.f32 %v854, %v883
        %v895 = vmul.f32 %v855, %v883
        %v896 = vmul.f32 %v856, %v883
        %v897 = vmul.f32 %v857, %v883
        %v898 = vmul.f32 %v858, %v883
        %v899 = vmul.f32 %v859, %v883
        %v900 = vmul.f32 %v860, %v883
        %v901 = vmul.f32 %v861, %v883
        %v902 = vmul.f32 %v862, %v883
        %v903 = vmul.f32 %v863, %v883
        %v904 = vmul.f32 %v864, %v883
        %v905 = vmul.f32 %v865, %v883
        %v906 = vmul.f32 %v866, %v883
        %v907 = vmul.f32 %v867, %v883
        %v908 = vmul.f32 %v868, %v883
        %v909 = vmul.f32 %v869, %v883
        %v910 = vmul.f32 %v870, %v883
        %v911 = vmul.f32 %v871, %v883
        %v912 = vmul.f32 %v872, %v883
        %v913 = vmul.f32 %v873, %v883
        %v914 = vmul.f32 %v874, %v883
        %v915 = vmul.f32 %v875, %v883
        %v916 = vadd.f32 %v812, %v884
        %v917 = vadd.f32 %v813, %v885
        %v918 = vadd.f32 %v814, %v886
        %v919 = vadd.f32 %v815, %v887
        %v920 = vadd.f32 %v816, %v888
        %v921 = vadd.f32 %v817, %v889
        %v922 = vadd.f32 %v818, %v890
        %v923 = vadd.f32 %v819, %v891
        %v924 = vadd.f32 %v820, %v892
        %v925 = vadd.f32 %v821, %v893
        %v926 = vadd.f32 %v822, %v894
        %v927 = vadd.f32 %v823, %v895
        %v928 = vadd.f32 %v824, %v896
        %v929 = vadd.f32 %v825, %v897
        %v930 = vadd.f32 %v826, %v898
        %v931 = vadd.f32 %v827, %v899
        %v932 = vadd.f32 %v828, %v900
        %v933 = vadd.f32 %v829, %v901
        %v934 = vadd.f32 %v830, %v902
        %v935 = vadd.f32 %v831, %v903
        %v936 = vadd.f32 %v832, %v904
        %v937 = vadd.f32 %v833, %v905
        %v938 = vadd.f32 %v834, %v906
        %v939 = vadd.f32 %v835, %v907
        %v940 = vadd.f32 %v836, %v908
        %v941 = vadd.f32 %v837, %v909
        %v942 = vadd.f32 %v838, %v910
        %v943 = vadd.f32 %v839, %v911
        %v944 = vadd.f32 %v840, %v912
        %v945 = vadd.f32 %v841, %v913
        %v946 = vadd.f32 %v842, %v914
        %v947 = vadd.f32 %v843, %v915
        %v948 = vlaneseq
        %v949 = vshrl.u32 %v948, 7
        %v950 = vsub.s32 5, %v949
        %v951 = vrot.slane %v361, %v950
        %v952 = vmul.f32 %v846, %v951
        %v953 = vmul.f32 %v847, %v951
        %v954 = vmul.f32 %v848, %v951
        %v955 = vmul.f32 %v849, %v951
        %v956 = vmul.f32 %v850, %v951
        %v957 = vmul.f32 %v851, %v951
        %v958 = vmul.f32 %v852, %v951
        %v959 = vmul.f32 %v853, %v951
        %v960 = vmul.f32 %v854, %v951
        %v961 = vmul.f32 %v855, %v951
        %v962 = vmul.f32 %v856, %v951
        %v963 = vmul.f32 %v857, %v951
        %v964 = vmul.f32 %v858, %v951
        %v965 = vmul.f32 %v859, %v951
        %v966 = vmul.f32 %v860, %v951
        %v967 = vmul.f32 %v861, %v951
        %v968 = vmul.f32 %v862, %v951
        %v969 = vmul.f32 %v863, %v951
        %v970 = vmul.f32 %v864, %v951
        %v971 = vmul.f32 %v865, %v951
        %v972 = vmul.f32 %v866, %v951
        %v973 = vmul.f32 %v867, %v951
        %v974 = vmul.f32 %v868, %v951
        %v975 = vmul.f32 %v869, %v951
        %v976 = vmul.f32 %v870, %v951
        %v977 = vmul.f32 %v871, %v951
        %v978 = vmul.f32 %v872, %v951
        %v979 = vmul.f32 %v873, %v951
        %v980 = vmul.f32 %v874, %v951
        %v981 = vmul.f32 %v875, %v951
        %v982 = vmul.f32 %v876, %v951
        %v983 = vmul.f32 %v877, %v951
        %v984 = vadd.f32 %v916, %v952
        %v985 = vadd.f32 %v917, %v953
        %v986 = vadd.f32 %v918, %v954
        %v987 = vadd.f32 %v919, %v955
        %v988 = vadd.f32 %v920, %v956
        %v989 = vadd.f32 %v921, %v957
        %v990 = vadd.f32 %v922, %v958
        %v991 = vadd.f32 %v923, %v959
        %v992 = vadd.f32 %v924, %v960
        %v993 = vadd.f32 %v925, %v961
        %v994 = vadd.f32 %v926, %v962
        %v995 = vadd.f32 %v927, %v963
        %v996 = vadd.f32 %v928, %v964
        %v997 = vadd.f32 %v929, %v965
        %v998 = vadd.f32 %v930, %v966
        %v999 = vadd.f32 %v931, %v967
        %v1000 = vadd.f32 %v932, %v968
        %v1001 = vadd.f32 %v933, %v969
        %v1002 = vadd.f32 %v934, %v970
        %v1003 = vadd.f32 %v935, %v971
        %v1004 = vadd.f32 %v936, %v972
        %v1005 = vadd.f32 %v937, %v973
        %v1006 = vadd.f32 %v938, %v974
        %v1007 = vadd.f32 %v939, %v975
        %v1008 = vadd.f32 %v940, %v976
        %v1009 = vadd.f32 %v941, %v977
        %v1010 = vadd.f32 %v942, %v978
        %v1011 = vadd.f32 %v943, %v979
        %v1012 = vadd.f32 %v944, %v980
        %v1013 = vadd.f32 %v945, %v981
        %v1014 = vadd.f32 %v946, %v982
        %v1015 = vadd.f32 %v947, %v983
        %v1016 = vlaneseq
        %v1017 = vshrl.u32 %v1016, 7
        %v1018 = vsub.s32 0, %v1017
        %v1019 = vrot.slane %v362, %v1018
        %v1020 = vmul.f32 %v848, %v1019
        %v1021 = vmul.f32 %v849, %v1019
        %v1022 = vmul.f32 %v850, %v1019
        %v1023 = vmul.f32 %v851, %v1019
        %v1024 = vmul.f32 %v852, %v1019
        %v1025 = vmul.f32 %v853, %v1019
        %v1026 = vmul.f32 %v854, %v1019
        %v1027 = vmul.f32 %v855, %v1019
        %v1028 = vmul.f32 %v856, %v1019
        %v1029 = vmul.f32 %v857, %v1019
        %v1030 = vmul.f32 %v858, %v1019
        %v1031 = vmul.f32 %v859, %v1019
        %v1032 = vmul.f32 %v860, %v1019
        %v1033 = vmul.f32 %v861, %v1019
        %v1034 = vmul.f32 %v862, %v1019
        %v1035 = vmul.f32 %v863, %v1019
        %v1036 = vmul.f32 %v864, %v1019
        %v1037 = vmul.f32 %v865, %v1019
        %v1038 = vmul.f32 %v866, %v1019
        %v1039 = vmul.f32 %v867, %v1019
        %v1040 = vmul.f32 %v868, %v1019
        %v1041 = vmul.f32 %v869, %v1019
        %v1042 = vmul.f32 %v870, %v1019
        %v1043 = vmul.f32 %v871, %v1019
        %v1044 = vmul.f32 %v872, %v1019
        %v1045 = vmul.f32 %v873, %v1019
        %v1046 = vmul.f32 %v874, %v1019
        %v1047 = vmul.f32 %v875, %v1019
        %v1048 = vmul.f32 %v876, %v1019
        %v1049 = vmul.f32 %v877, %v1019
        %v1050 = vmul.f32 %v878, %v1019
        %v1051 = vmul.f32 %v879, %v1019
        %v1052 = vadd.f32 %v984, %v1020
        %v1053 = vadd.f32 %v985, %v1021
        %v1054 = vadd.f32 %v986, %v1022
        %v1055 = vadd.f32 %v987, %v1023
        %v1056 = vadd.f32 %v988, %v1024
        %v1057 = vadd.f32 %v989, %v1025
        %v1058 = vadd.f32 %v990, %v1026
        %v1059 = vadd.f32 %v991, %v1027
        %v1060 = vadd.f32 %v992, %v1028
        %v1061 = vadd.f32 %v993, %v1029
        %v1062 = vadd.f32 %v994, %v1030
        %v1063 = vadd.f32 %v995, %v1031
        %v1064 = vadd.f32 %v996, %v1032
        %v1065 = vadd.f32 %v997, %v1033
        %v1066 = vadd.f32 %v998, %v1034
        %v1067 = vadd.f32 %v999, %v1035
        %v1068 = vadd.f32 %v1000, %v1036
        %v1069 = vadd.f32 %v1001, %v1037
        %v1070 = vadd.f32 %v1002, %v1038
        %v1071 = vadd.f32 %v1003, %v1039
        %v1072 = vadd.f32 %v1004, %v1040
        %v1073 = vadd.f32 %v1005, %v1041
        %v1074 = vadd.f32 %v1006, %v1042
        %v1075 = vadd.f32 %v1007, %v1043
        %v1076 = vadd.f32 %v1008, %v1044
        %v1077 = vadd.f32 %v1009, %v1045
        %v1078 = vadd.f32 %v1010, %v1046
        %v1079 = vadd.f32 %v1011, %v1047
        %v1080 = vadd.f32 %v1012, %v1048
        %v1081 = vadd.f32 %v1013, %v1049
        %v1082 = vadd.f32 %v1014, %v1050
        %v1083 = vadd.f32 %v1015, %v1051
        %v1085 = vlaneseq
        %v1086 = vshrl.u32 %v1085, 7
        %v1087 = vsub.s32 0, %v1086
        %v1088 = vrot.slane %v363, %v1087
        %v1090 = vadd.f32 %v1052, %v1088
        %v1091 = vadd.f32 %v1053, %v1088
        %v1092 = vadd.f32 %v1054, %v1088
        %v1093 = vadd.f32 %v1055, %v1088
        %v1094 = vadd.f32 %v1056, %v1088
        %v1095 = vadd.f32 %v1057, %v1088
        %v1096 = vadd.f32 %v1058, %v1088
        %v1097 = vadd.f32 %v1059, %v1088
        %v1098 = vadd.f32 %v1060, %v1088
        %v1099 = vadd.f32 %v1061, %v1088
        %v1100 = vadd.f32 %v1062, %v1088
        %v1101 = vadd.f32 %v1063, %v1088
        %v1102 = vadd.f32 %v1064, %v1088
        %v1103 = vadd.f32 %v1065, %v1088
        %v1104 = vadd.f32 %v1066, %v1088
        %v1105 = vadd.f32 %v1067, %v1088
        %v1106 = vadd.f32 %v1068, %v1088
        %v1107 = vadd.f32 %v1069, %v1088
        %v1108 = vadd.f32 %v1070, %v1088
        %v1109 = vadd.f32 %v1071, %v1088
        %v1110 = vadd.f32 %v1072, %v1088
        %v1111 = vadd.f32 %v1073, %v1088
        %v1112 = vadd.f32 %v1074, %v1088
        %v1113 = vadd.f32 %v1075, %v1088
        %v1114 = vadd.f32 %v1076, %v1088
        %v1115 = vadd.f32 %v1077, %v1088
        %v1116 = vadd.f32 %v1078, %v1088
        %v1117 = vadd.f32 %v1079, %v1088
        %v1118 = vadd.f32 %v1080, %v1088
        %v1119 = vadd.f32 %v1081, %v1088
        %v1120 = vadd.f32 %v1082, %v1088
        %v1121 = vadd.f32 %v1083, %v1088
        %1122 = vst [vmem:[%s238] sm:$0xff] %v1090
        %1123 = vst [vmem:[%s238 + $0x8] sm:$0xff] %v1091
        %1124 = vst [vmem:[%s238 + $0x10] sm:$0xff] %v1092
        %1125 = vst [vmem:[%s238 + $0x18] sm:$0xff] %v1093
        %1126 = vst [vmem:[%s238 + $0x20] sm:$0xff] %v1094
        %1127 = vst [vmem:[%s238 + $0x28] sm:$0xff] %v1095
        %1128 = vst [vmem:[%s238 + $0x30] sm:$0xff] %v1096
        %1129 = vst [vmem:[%s238 + $0x38] sm:$0xff] %v1097
        %1130 = vst [vmem:[%s238 + $0x40] sm:$0xff] %v1098
        %1131 = vst [vmem:[%s238 + $0x48] sm:$0xff] %v1099
        %1132 = vst [vmem:[%s238 + $0x50] sm:$0xff] %v1100
        %1133 = vst [vmem:[%s238 + $0x58] sm:$0xff] %v1101
        %1134 = vst [vmem:[%s238 + $0x60] sm:$0xff] %v1102
        %1135 = vst [vmem:[%s238 + $0x68] sm:$0xff] %v1103
        %1136 = vst [vmem:[%s238 + $0x70] sm:$0xff] %v1104
        %1137 = vst [vmem:[%s238 + $0x78] sm:$0xff] %v1105
        %1138 = vst [vmem:[%s238 + $0x80] sm:$0xff] %v1106
        %1139 = vst [vmem:[%s238 + $0x88] sm:$0xff] %v1107
        %1140 = vst [vmem:[%s238 + $0x90] sm:$0xff] %v1108
        %1141 = vst [vmem:[%s238 + $0x98] sm:$0xff] %v1109
        %1142 = vst [vmem:[%s238 + $0xa0] sm:$0xff] %v1110
        %1143 = vst [vmem:[%s238 + $0xa8] sm:$0xff] %v1111
        %1144 = vst [vmem:[%s238 + $0xb0] sm:$0xff] %v1112
        %1145 = vst [vmem:[%s238 + $0xb8] sm:$0xff] %v1113
        %1146 = vst [vmem:[%s238 + $0xc0] sm:$0xff] %v1114
        %1147 = vst [vmem:[%s238 + $0xc8] sm:$0xff] %v1115
        %1148 = vst [vmem:[%s238 + $0xd0] sm:$0xff] %v1116
        %1149 = vst [vmem:[%s238 + $0xd8] sm:$0xff] %v1117
        %1150 = vst [vmem:[%s238 + $0xe0] sm:$0xff] %v1118
        %1151 = vst [vmem:[%s238 + $0xe8] sm:$0xff] %v1119
        %1152 = vst [vmem:[%s238 + $0xf0] sm:$0xff] %v1120
        %1153 = vst [vmem:[%s238 + $0xf8] sm:$0xff] %v1121
        %s1154 = sand.u32 %s123, 1
        %s1155 = scalar_lea.sflag [#allocation5], %s1154
        %s1156 = sand.u32 %s123, 1
        %s1157 = smul.addr %s1156, 256
        %s1158 = scalar_lea.vmem [#allocation8], %s1157
        // Predicated region
        $region41: #{tpu_custom_call.1} parent=31 // pred_check
          %p1159 = pneg %p133
        $region42: #{tpu_custom_call.1} parent=31 // pred_check_branch
          %1161 = sbr.rel (%p1159) target = $region44
        $region43: #{tpu_custom_call.1} parent=31 // pred_region
          %s1163 = ssub.s32 4096, 4096
          %1164 = vsyncadd %s1155, %s1163
          %s1165 = smul.addr %s25, 32
          %s1166 = sadd.s32 %s26, %s1165
          %s1167 = smul.addr %s1166, 128
          %s1168 = scalar_lea.hbm %s3, %s1167
          %s1169 = sshll.u32 %s1158, 4
          %s1170 = int_to_ptr.vmem [resolvable:$true] %s1169
          %1175 = dma.vmem_to_hbm [thread:$0]  %s1170, 4096, %s1168, %s1155, 128, 128, 8
        $region44: #{tpu_custom_call.1} parent=31 // pred_fallthru
          _
      $region32: #{tpu_custom_call.1} parent=5 // pred_fallthru
        _
      %p1176 = scmp.le.s32.totalorder 2, %s16
      // Predicated region
      $region45: #{tpu_custom_call.1} parent=5 // pred_check
        %p1177 = pneg %p1176
      $region46: #{tpu_custom_call.1} parent=5 // pred_check_branch
        %1179 = sbr.rel (%p1177) target = $region48
      $region47: #{tpu_custom_call.1} parent=5 // pred_region
        %s1180 = ssub.s32 %s16, 2
        // Predicated region
        $region49: #{tpu_custom_call.1} parent=47 // pred_check
          %p1181 = pneg %p139
        $region50: #{tpu_custom_call.1} parent=47 // pred_check_branch
          %1183 = sbr.rel (%p1181) target = $region52
        $region51: #{tpu_custom_call.1} parent=47 // pred_region
          %s1184 = sand.u32 %s124, 1
          %s1185 = scalar_lea.sflag [#allocation5], %s1184
          %s1186 = sand.u32 %s124, 1
          %s1187 = smul.addr %s1186, 256
          %s1188 = scalar_lea.vmem [#allocation8], %s1187
          %1189 = dma.done %s1185, 4096
        $region52: #{tpu_custom_call.1} parent=47 // pred_fallthru
          _
      $region48: #{tpu_custom_call.1} parent=5 // pred_fallthru
        _
    $region6: #{tpu_custom_call.1} parent=1 // loop_footer
      %s20 = sadd.s32 1, %s16
    $region7: #{tpu_custom_call.1} parent=1 // loop_footer_branch
      %15 = sbr.rel target = $region3
    $region8: #{tpu_custom_call.1} parent=1 // loop_exit
      _
    %1190 = vsyncpa [#allocation4], 1
    %s1191 = scalar_lea.sflag [#allocation4], 1
    %1192 = vsyncpa %s1191, 1
    %1193 = vsyncpa [#allocation7], 1
    %1194 = vsyncpa [#allocation5], 1
    %s1195 = scalar_lea.sflag [#allocation5], 1
    %1196 = vsyncpa %s1195, 1

</llo_original>
